<compile_context>
chip_gen: v7x
topology: tpu7x:2x2x1
jax: 0.10.0
libtpu: 0.0.40
codegen_flags: <defaults>
</compile_context>

<pallas_src>
import jax
import jax.numpy as jnp
from jax import lax
from jax.experimental import pallas as pl
from jax.experimental.pallas import tpu as pltpu


def lif_seq_kernel(x_ref, w_ref, b_ref, thr_ref, dec_ref, v0_ref,
                   spikes_ref, v_out_ref, y_scratch, v_scratch):
    T, B, In = x_ref.shape
    Out = w_ref.shape[0]

    # One big MXU matmul for all timesteps: [T*B, In] x [Out, In]^T -> [T*B, Out].
    # bf16 operands, f32 accumulation; contracting W's axis 1 avoids any
    # materialized transpose of the weight.
    x2d = x_ref[...].reshape(T * B, In)
    y = lax.dot_general(
        x2d, w_ref[...],
        dimension_numbers=(((1,), (1,)), ((), ())),
        preferred_element_type=jnp.float32,
    )
    # Bias added once here (hoisted out of the recurrence loop).
    y_scratch[...] = (y + b_ref[...]).reshape(T, B, Out)

    # Hoist per-neuron parameter broadcasts out of the time loop
    # (JAX does not CSE broadcast_in_dim).
    dec_b = jnp.broadcast_to(dec_ref[...], (B, Out))
    thr_b = jnp.broadcast_to(thr_ref[...], (B, Out))

    # Membrane state lives in VMEM scratch for the whole recurrence
    # (no per-step HBM round trip).
    v_scratch[...] = v0_ref[...]

    def step(t, carry):
        v_new = v_scratch[...] * dec_b + y_scratch[t]
        s = jax.nn.sigmoid(5.0 * (v_new - thr_b))       # EUP transcendental
        spikes_ref[t] = s.astype(spikes_ref.dtype)
        v_scratch[...] = v_new * (1.0 - s)              # soft reset
        return carry

    lax.fori_loop(0, T, step, 0, unroll=True)
    v_out_ref[...] = v_scratch[...]


def lif_forward_sequence(x_seq, w, b, threshold, decay, v0):
    """Run TrainableLIFLayer over a whole T-step sequence in one fused kernel.

    Args:
      x_seq: [T, B, In] inputs (one slice per forward() call of the module).
      w: [Out, In] linear weight (PyTorch nn.Linear layout, NOT transposed).
      b, threshold, decay: [Out] per-neuron parameters.
      v0: [B, Out] initial membrane potential.
    Returns:
      (spikes [T, B, Out] f32, v_final [B, Out] f32)
    """
    T, B, In = x_seq.shape
    Out = w.shape[0]

    # bf16 matmul operands (halves matmul-input DMA bytes, 2x MXU on v6e/v7x);
    # accumulation and all LIF elementwise math remain f32.
    x_bf = x_seq.astype(jnp.bfloat16)
    w_bf = w.astype(jnp.bfloat16)
    b2 = b.reshape(1, Out).astype(jnp.float32)
    thr2 = threshold.reshape(1, Out).astype(jnp.float32)
    dec2 = decay.reshape(1, Out).astype(jnp.float32)
    v0 = v0.astype(jnp.float32)

    vmem = pl.BlockSpec(memory_space=pltpu.VMEM)
    spikes, v_final = pl.pallas_call(
        lif_seq_kernel,
        out_shape=(
            jax.ShapeDtypeStruct((T, B, Out), jnp.float32),
            jax.ShapeDtypeStruct((B, Out), jnp.float32),
        ),
        in_specs=[vmem] * 6,
        out_specs=(vmem, vmem),
        scratch_shapes=[
            pltpu.VMEM((T, B, Out), jnp.float32),   # projected inputs, all t
            pltpu.VMEM((B, Out), jnp.float32),      # resident membrane state
        ],
        input_output_aliases={5: 1},                # v0 buffer -> v_final
    )(x_bf, w_bf, b2, thr2, dec2, v0)
    return spikes, v_final


def init_params(key, input_size, output_size):
    """Deterministic synthetic init matching the PyTorch module's shapes/ranges."""
    k_w, k_b, k_thr, k_dec = jax.random.split(key, 4)
    bound = 1.0 / jnp.sqrt(jnp.float32(input_size))
    w = jax.random.uniform(k_w, (output_size, input_size), jnp.float32,
                           minval=-bound, maxval=bound)
    b = jax.random.uniform(k_b, (output_size,), jnp.float32,
                           minval=-bound, maxval=bound)
    threshold = jax.random.uniform(k_thr, (output_size,), jnp.float32) * 1.0
    decay = jax.random.uniform(k_dec, (output_size,), jnp.float32) * 0.5 + 0.4
    return w, b, threshold, decay


if __name__ == "__main__":
    # T*B = 128 rows feeds the MXU a full systolic pass.
    T, B, In, Out = 16, 8, 64, 128

    key = jax.random.PRNGKey(0)
    k_params, k_x = jax.random.split(key)
    w, b, threshold, decay = init_params(k_params, In, Out)
    x_seq = jax.random.normal(k_x, (T, B, In), jnp.float32)
    v0 = jnp.zeros((B, Out), jnp.float32)           # reset_state(batch_size)

    fused = jax.jit(lif_forward_sequence)
    spikes, v_final = fused(x_seq, w, b, threshold, decay, v0)
    jax.block_until_ready((spikes, v_final))

    # Pure-JAX reference: same per-step semantics as the PyTorch module,
    # with identical bf16 matmul operands / f32 accumulation.
    def ref_sequence(x_seq, v_init):
        w_bf = w.astype(jnp.bfloat16)

        def step(v, x_t):
            y = jnp.dot(x_t.astype(jnp.bfloat16), w_bf.T,
                        preferred_element_type=jnp.float32) + b
            v_new = v * decay + y
            s = jax.nn.sigmoid(5.0 * (v_new - threshold))
            return v_new * (1.0 - s), s

        v_fin, s_all = lax.scan(step, v_init, x_seq)
        return s_all, v_fin

    s_ref, v_ref = ref_sequence(x_seq, jnp.zeros((B, Out), jnp.float32))
    assert jnp.allclose(spikes, s_ref, atol=1e-4, rtol=1e-4)
    assert jnp.allclose(v_final, v_ref, atol=1e-4, rtol=1e-4)

    print("KERNEL_OK")
</pallas_src>

<mosaic_0001>
module attributes {stable_mosaic.version = 11 : i64} {
  func.func @lif_seq_kernel(%arg0: memref<16x8x64xbf16, #tpu.memory_space<vmem>>, %arg1: memref<128x64xbf16, #tpu.memory_space<vmem>>, %arg2: memref<1x128xf32, #tpu.memory_space<vmem>>, %arg3: memref<1x128xf32, #tpu.memory_space<vmem>>, %arg4: memref<1x128xf32, #tpu.memory_space<vmem>>, %arg5: memref<8x128xf32, #tpu.memory_space<vmem>>, %arg6: memref<16x8x128xf32, #tpu.memory_space<vmem>>, %arg7: memref<8x128xf32, #tpu.memory_space<vmem>>, %arg8: memref<16x8x128xf32, #tpu.memory_space<vmem>>, %arg9: memref<8x128xf32, #tpu.memory_space<vmem>>) attributes {dimension_semantics = [], scalar_prefetch = 0 : i64, scratch_operands = 2 : i64, tpu.core_type = #tpu.core_type<tc>} {
    %c0 = arith.constant 0 : index
    %c0_0 = arith.constant 0 : index
    %c0_1 = arith.constant 0 : index
    %0 = vector.load %arg0[%c0, %c0_0, %c0_1] : memref<16x8x64xbf16, #tpu.memory_space<vmem>>, vector<16x8x64xbf16>
    %1 = vector.shape_cast %0 : vector<16x8x64xbf16> to vector<128x64xbf16>
    %c0_2 = arith.constant 0 : index
    %c0_3 = arith.constant 0 : index
    %2 = vector.load %arg1[%c0_2, %c0_3] : memref<128x64xbf16, #tpu.memory_space<vmem>>, vector<128x64xbf16>
    %cst = arith.constant dense<0.000000e+00> : vector<128x128xf32>
    %3 = tpu.matmul %1, %2, %cst {dimension_numbers = #tpu.dot_dimension_numbers<[1], [1], [0], [0], [0, 0, 1, 0], [], []>} : vector<128x64xbf16>, vector<128x64xbf16>, vector<128x128xf32> -> vector<128x128xf32>
    %c0_4 = arith.constant 0 : index
    %c0_5 = arith.constant 0 : index
    %4 = vector.load %arg2[%c0_4, %c0_5] : memref<1x128xf32, #tpu.memory_space<vmem>>, vector<1x128xf32>
    %5 = vector.broadcast %4 : vector<1x128xf32> to vector<128x128xf32>
    %6 = arith.addf %3, %5 : vector<128x128xf32>
    %7 = vector.shape_cast %6 : vector<128x128xf32> to vector<16x8x128xf32>
    %c0_6 = arith.constant 0 : index
    %c0_7 = arith.constant 0 : index
    %c0_8 = arith.constant 0 : index
    %8 = vector.load %arg8[%c0_6, %c0_7, %c0_8] : memref<16x8x128xf32, #tpu.memory_space<vmem>>, vector<16x8x128xf32>
    tpu.vector_store %arg8[%c0_6, %c0_7, %c0_8], %7 {strides = array<i32>} : memref<16x8x128xf32, #tpu.memory_space<vmem>>, vector<16x8x128xf32>,
    %c0_9 = arith.constant 0 : index
    %c0_10 = arith.constant 0 : index
    %9 = vector.load %arg4[%c0_9, %c0_10] : memref<1x128xf32, #tpu.memory_space<vmem>>, vector<1x128xf32>
    %10 = vector.shape_cast %9 : vector<1x128xf32> to vector<1x128xf32>
    %11 = vector.broadcast %10 : vector<1x128xf32> to vector<8x128xf32>
    %c0_11 = arith.constant 0 : index
    %c0_12 = arith.constant 0 : index
    %12 = vector.load %arg3[%c0_11, %c0_12] : memref<1x128xf32, #tpu.memory_space<vmem>>, vector<1x128xf32>
    %13 = vector.shape_cast %12 : vector<1x128xf32> to vector<1x128xf32>
    %14 = vector.broadcast %13 : vector<1x128xf32> to vector<8x128xf32>
    %c0_13 = arith.constant 0 : index
    %c0_14 = arith.constant 0 : index
    %15 = vector.load %arg5[%c0_13, %c0_14] : memref<8x128xf32, #tpu.memory_space<vmem>>, vector<8x128xf32>
    %c0_15 = arith.constant 0 : index
    %c0_16 = arith.constant 0 : index
    %16 = vector.load %arg9[%c0_15, %c0_16] : memref<8x128xf32, #tpu.memory_space<vmem>>, vector<8x128xf32>
    tpu.vector_store %arg9[%c0_15, %c0_16], %15 {strides = array<i32>} : memref<8x128xf32, #tpu.memory_space<vmem>>, vector<8x128xf32>,
    %c0_i32 = arith.constant 0 : i32
    %c0_17 = arith.constant 0 : index
    %c0_18 = arith.constant 0 : index
    %17 = vector.load %arg9[%c0_17, %c0_18] : memref<8x128xf32, #tpu.memory_space<vmem>>, vector<8x128xf32>
    %18 = arith.mulf %17, %11 : vector<8x128xf32>
    %19 = arith.index_cast %c0_i32 : i32 to index
    %c0_19 = arith.constant 0 : index
    %c0_20 = arith.constant 0 : index
    %20 = vector.load %arg8[%19, %c0_19, %c0_20] : memref<16x8x128xf32, #tpu.memory_space<vmem>>, vector<1x8x128xf32>
    %21 = vector.shape_cast %20 : vector<1x8x128xf32> to vector<8x128xf32>
    %22 = arith.addf %18, %21 : vector<8x128xf32>
    %23 = arith.subf %22, %14 : vector<8x128xf32>
    %cst_21 = arith.constant 5.000000e+00 : f32
    %24 = vector.broadcast %cst_21 : f32 to vector<8x128xf32>
    %25 = arith.mulf %24, %23 : vector<8x128xf32>
    %26 = arith.negf %25 : vector<8x128xf32>
    %27 = math.exp %26 : vector<8x128xf32>
    %cst_22 = arith.constant 1.000000e+00 : f32
    %28 = vector.broadcast %cst_22 : f32 to vector<8x128xf32>
    %29 = arith.addf %28, %27 : vector<8x128xf32>
    %30 = arith.divf %28, %29 : vector<8x128xf32>
    %31 = arith.index_cast %c0_i32 : i32 to index
    %c0_23 = arith.constant 0 : index
    %c0_24 = arith.constant 0 : index
    %32 = vector.load %arg6[%31, %c0_23, %c0_24] : memref<16x8x128xf32, #tpu.memory_space<vmem>>, vector<1x8x128xf32>
    %33 = vector.shape_cast %32 : vector<1x8x128xf32> to vector<8x128xf32>
    %34 = vector.shape_cast %30 : vector<8x128xf32> to vector<1x8x128xf32>
    tpu.vector_store %arg6[%31, %c0_23, %c0_24], %34 {strides = array<i32>} : memref<16x8x128xf32, #tpu.memory_space<vmem>>, vector<1x8x128xf32>,
    %cst_25 = arith.constant 1.000000e+00 : f32
    %35 = vector.broadcast %cst_25 : f32 to vector<8x128xf32>
    %36 = arith.subf %35, %30 : vector<8x128xf32>
    %37 = arith.mulf %22, %36 : vector<8x128xf32>
    %c0_26 = arith.constant 0 : index
    %c0_27 = arith.constant 0 : index
    %38 = vector.load %arg9[%c0_26, %c0_27] : memref<8x128xf32, #tpu.memory_space<vmem>>, vector<8x128xf32>
    tpu.vector_store %arg9[%c0_26, %c0_27], %37 {strides = array<i32>} : memref<8x128xf32, #tpu.memory_space<vmem>>, vector<8x128xf32>,
    %c1_i32 = arith.constant 1 : i32
    %c0_28 = arith.constant 0 : index
    %c0_29 = arith.constant 0 : index
    %39 = vector.load %arg9[%c0_28, %c0_29] : memref<8x128xf32, #tpu.memory_space<vmem>>, vector<8x128xf32>
    %40 = arith.mulf %39, %11 : vector<8x128xf32>
    %41 = arith.index_cast %c1_i32 : i32 to index
    %c0_30 = arith.constant 0 : index
    %c0_31 = arith.constant 0 : index
    %42 = vector.load %arg8[%41, %c0_30, %c0_31] : memref<16x8x128xf32, #tpu.memory_space<vmem>>, vector<1x8x128xf32>
    %43 = vector.shape_cast %42 : vector<1x8x128xf32> to vector<8x128xf32>
    %44 = arith.addf %40, %43 : vector<8x128xf32>
    %45 = arith.subf %44, %14 : vector<8x128xf32>
    %cst_32 = arith.constant 5.000000e+00 : f32
    %46 = vector.broadcast %cst_32 : f32 to vector<8x128xf32>
    %47 = arith.mulf %46, %45 : vector<8x128xf32>
    %48 = arith.negf %47 : vector<8x128xf32>
    %49 = math.exp %48 : vector<8x128xf32>
    %cst_33 = arith.constant 1.000000e+00 : f32
    %50 = vector.broadcast %cst_33 : f32 to vector<8x128xf32>
    %51 = arith.addf %50, %49 : vector<8x128xf32>
    %52 = arith.divf %50, %51 : vector<8x128xf32>
    %53 = arith.index_cast %c1_i32 : i32 to index
    %c0_34 = arith.constant 0 : index
    %c0_35 = arith.constant 0 : index
    %54 = vector.load %arg6[%53, %c0_34, %c0_35] : memref<16x8x128xf32, #tpu.memory_space<vmem>>, vector<1x8x128xf32>
    %55 = vector.shape_cast %54 : vector<1x8x128xf32> to vector<8x128xf32>
    %56 = vector.shape_cast %52 : vector<8x128xf32> to vector<1x8x128xf32>
    tpu.vector_store %arg6[%53, %c0_34, %c0_35], %56 {strides = array<i32>} : memref<16x8x128xf32, #tpu.memory_space<vmem>>, vector<1x8x128xf32>,
    %cst_36 = arith.constant 1.000000e+00 : f32
    %57 = vector.broadcast %cst_36 : f32 to vector<8x128xf32>
    %58 = arith.subf %57, %52 : vector<8x128xf32>
    %59 = arith.mulf %44, %58 : vector<8x128xf32>
    %c0_37 = arith.constant 0 : index
    %c0_38 = arith.constant 0 : index
    %60 = vector.load %arg9[%c0_37, %c0_38] : memref<8x128xf32, #tpu.memory_space<vmem>>, vector<8x128xf32>
    tpu.vector_store %arg9[%c0_37, %c0_38], %59 {strides = array<i32>} : memref<8x128xf32, #tpu.memory_space<vmem>>, vector<8x128xf32>,
    %c2_i32 = arith.constant 2 : i32
    %c0_39 = arith.constant 0 : index
    %c0_40 = arith.constant 0 : index
    %61 = vector.load %arg9[%c0_39, %c0_40] : memref<8x128xf32, #tpu.memory_space<vmem>>, vector<8x128xf32>
    %62 = arith.mulf %61, %11 : vector<8x128xf32>
    %63 = arith.index_cast %c2_i32 : i32 to index
    %c0_41 = arith.constant 0 : index
    %c0_42 = arith.constant 0 : index
    %64 = vector.load %arg8[%63, %c0_41, %c0_42] : memref<16x8x128xf32, #tpu.memory_space<vmem>>, vector<1x8x128xf32>
    %65 = vector.shape_cast %64 : vector<1x8x128xf32> to vector<8x128xf32>
    %66 = arith.addf %62, %65 : vector<8x128xf32>
    %67 = arith.subf %66, %14 : vector<8x128xf32>
    %cst_43 = arith.constant 5.000000e+00 : f32
    %68 = vector.broadcast %cst_43 : f32 to vector<8x128xf32>
    %69 = arith.mulf %68, %67 : vector<8x128xf32>
    %70 = arith.negf %69 : vector<8x128xf32>
    %71 = math.exp %70 : vector<8x128xf32>
    %cst_44 = arith.constant 1.000000e+00 : f32
    %72 = vector.broadcast %cst_44 : f32 to vector<8x128xf32>
    %73 = arith.addf %72, %71 : vector<8x128xf32>
    %74 = arith.divf %72, %73 : vector<8x128xf32>
    %75 = arith.index_cast %c2_i32 : i32 to index
    %c0_45 = arith.constant 0 : index
    %c0_46 = arith.constant 0 : index
    %76 = vector.load %arg6[%75, %c0_45, %c0_46] : memref<16x8x128xf32, #tpu.memory_space<vmem>>, vector<1x8x128xf32>
    %77 = vector.shape_cast %76 : vector<1x8x128xf32> to vector<8x128xf32>
    %78 = vector.shape_cast %74 : vector<8x128xf32> to vector<1x8x128xf32>
    tpu.vector_store %arg6[%75, %c0_45, %c0_46], %78 {strides = array<i32>} : memref<16x8x128xf32, #tpu.memory_space<vmem>>, vector<1x8x128xf32>,
    %cst_47 = arith.constant 1.000000e+00 : f32
    %79 = vector.broadcast %cst_47 : f32 to vector<8x128xf32>
    %80 = arith.subf %79, %74 : vector<8x128xf32>
    %81 = arith.mulf %66, %80 : vector<8x128xf32>
    %c0_48 = arith.constant 0 : index
    %c0_49 = arith.constant 0 : index
    %82 = vector.load %arg9[%c0_48, %c0_49] : memref<8x128xf32, #tpu.memory_space<vmem>>, vector<8x128xf32>
    tpu.vector_store %arg9[%c0_48, %c0_49], %81 {strides = array<i32>} : memref<8x128xf32, #tpu.memory_space<vmem>>, vector<8x128xf32>,
    %c3_i32 = arith.constant 3 : i32
    %c0_50 = arith.constant 0 : index
    %c0_51 = arith.constant 0 : index
    %83 = vector.load %arg9[%c0_50, %c0_51] : memref<8x128xf32, #tpu.memory_space<vmem>>, vector<8x128xf32>
    %84 = arith.mulf %83, %11 : vector<8x128xf32>
    %85 = arith.index_cast %c3_i32 : i32 to index
    %c0_52 = arith.constant 0 : index
    %c0_53 = arith.constant 0 : index
    %86 = vector.load %arg8[%85, %c0_52, %c0_53] : memref<16x8x128xf32, #tpu.memory_space<vmem>>, vector<1x8x128xf32>
    %87 = vector.shape_cast %86 : vector<1x8x128xf32> to vector<8x128xf32>
    %88 = arith.addf %84, %87 : vector<8x128xf32>
    %89 = arith.subf %88, %14 : vector<8x128xf32>
    %cst_54 = arith.constant 5.000000e+00 : f32
    %90 = vector.broadcast %cst_54 : f32 to vector<8x128xf32>
    %91 = arith.mulf %90, %89 : vector<8x128xf32>
    %92 = arith.negf %91 : vector<8x128xf32>
    %93 = math.exp %92 : vector<8x128xf32>
    %cst_55 = arith.constant 1.000000e+00 : f32
    %94 = vector.broadcast %cst_55 : f32 to vector<8x128xf32>
    %95 = arith.addf %94, %93 : vector<8x128xf32>
    %96 = arith.divf %94, %95 : vector<8x128xf32>
    %97 = arith.index_cast %c3_i32 : i32 to index
    %c0_56 = arith.constant 0 : index
    %c0_57 = arith.constant 0 : index
    %98 = vector.load %arg6[%97, %c0_56, %c0_57] : memref<16x8x128xf32, #tpu.memory_space<vmem>>, vector<1x8x128xf32>
    %99 = vector.shape_cast %98 : vector<1x8x128xf32> to vector<8x128xf32>
    %100 = vector.shape_cast %96 : vector<8x128xf32> to vector<1x8x128xf32>
    tpu.vector_store %arg6[%97, %c0_56, %c0_57], %100 {strides = array<i32>} : memref<16x8x128xf32, #tpu.memory_space<vmem>>, vector<1x8x128xf32>,
    %cst_58 = arith.constant 1.000000e+00 : f32
    %101 = vector.broadcast %cst_58 : f32 to vector<8x128xf32>
    %102 = arith.subf %101, %96 : vector<8x128xf32>
    %103 = arith.mulf %88, %102 : vector<8x128xf32>
    %c0_59 = arith.constant 0 : index
    %c0_60 = arith.constant 0 : index
    %104 = vector.load %arg9[%c0_59, %c0_60] : memref<8x128xf32, #tpu.memory_space<vmem>>, vector<8x128xf32>
    tpu.vector_store %arg9[%c0_59, %c0_60], %103 {strides = array<i32>} : memref<8x128xf32, #tpu.memory_space<vmem>>, vector<8x128xf32>,
    %c4_i32 = arith.constant 4 : i32
    %c0_61 = arith.constant 0 : index
    %c0_62 = arith.constant 0 : index
    %105 = vector.load %arg9[%c0_61, %c0_62] : memref<8x128xf32, #tpu.memory_space<vmem>>, vector<8x128xf32>
    %106 = arith.mulf %105, %11 : vector<8x128xf32>
    %107 = arith.index_cast %c4_i32 : i32 to index
    %c0_63 = arith.constant 0 : index
    %c0_64 = arith.constant 0 : index
    %108 = vector.load %arg8[%107, %c0_63, %c0_64] : memref<16x8x128xf32, #tpu.memory_space<vmem>>, vector<1x8x128xf32>
    %109 = vector.shape_cast %108 : vector<1x8x128xf32> to vector<8x128xf32>
    %110 = arith.addf %106, %109 : vector<8x128xf32>
    %111 = arith.subf %110, %14 : vector<8x128xf32>
    %cst_65 = arith.constant 5.000000e+00 : f32
    %112 = vector.broadcast %cst_65 : f32 to vector<8x128xf32>
    %113 = arith.mulf %112, %111 : vector<8x128xf32>
    %114 = arith.negf %113 : vector<8x128xf32>
    %115 = math.exp %114 : vector<8x128xf32>
    %cst_66 = arith.constant 1.000000e+00 : f32
    %116 = vector.broadcast %cst_66 : f32 to vector<8x128xf32>
    %117 = arith.addf %116, %115 : vector<8x128xf32>
    %118 = arith.divf %116, %117 : vector<8x128xf32>
    %119 = arith.index_cast %c4_i32 : i32 to index
    %c0_67 = arith.constant 0 : index
    %c0_68 = arith.constant 0 : index
    %120 = vector.load %arg6[%119, %c0_67, %c0_68] : memref<16x8x128xf32, #tpu.memory_space<vmem>>, vector<1x8x128xf32>
    %121 = vector.shape_cast %120 : vector<1x8x128xf32> to vector<8x128xf32>
    %122 = vector.shape_cast %118 : vector<8x128xf32> to vector<1x8x128xf32>
    tpu.vector_store %arg6[%119, %c0_67, %c0_68], %122 {strides = array<i32>} : memref<16x8x128xf32, #tpu.memory_space<vmem>>, vector<1x8x128xf32>,
    %cst_69 = arith.constant 1.000000e+00 : f32
    %123 = vector.broadcast %cst_69 : f32 to vector<8x128xf32>
    %124 = arith.subf %123, %118 : vector<8x128xf32>
    %125 = arith.mulf %110, %124 : vector<8x128xf32>
    %c0_70 = arith.constant 0 : index
    %c0_71 = arith.constant 0 : index
    %126 = vector.load %arg9[%c0_70, %c0_71] : memref<8x128xf32, #tpu.memory_space<vmem>>, vector<8x128xf32>
    tpu.vector_store %arg9[%c0_70, %c0_71], %125 {strides = array<i32>} : memref<8x128xf32, #tpu.memory_space<vmem>>, vector<8x128xf32>,
    %c5_i32 = arith.constant 5 : i32
    %c0_72 = arith.constant 0 : index
    %c0_73 = arith.constant 0 : index
    %127 = vector.load %arg9[%c0_72, %c0_73] : memref<8x128xf32, #tpu.memory_space<vmem>>, vector<8x128xf32>
    %128 = arith.mulf %127, %11 : vector<8x128xf32>
    %129 = arith.index_cast %c5_i32 : i32 to index
    %c0_74 = arith.constant 0 : index
    %c0_75 = arith.constant 0 : index
    %130 = vector.load %arg8[%129, %c0_74, %c0_75] : memref<16x8x128xf32, #tpu.memory_space<vmem>>, vector<1x8x128xf32>
    %131 = vector.shape_cast %130 : vector<1x8x128xf32> to vector<8x128xf32>
    %132 = arith.addf %128, %131 : vector<8x128xf32>
    %133 = arith.subf %132, %14 : vector<8x128xf32>
    %cst_76 = arith.constant 5.000000e+00 : f32
    %134 = vector.broadcast %cst_76 : f32 to vector<8x128xf32>
    %135 = arith.mulf %134, %133 : vector<8x128xf32>
    %136 = arith.negf %135 : vector<8x128xf32>
    %137 = math.exp %136 : vector<8x128xf32>
    %cst_77 = arith.constant 1.000000e+00 : f32
    %138 = vector.broadcast %cst_77 : f32 to vector<8x128xf32>
    %139 = arith.addf %138, %137 : vector<8x128xf32>
    %140 = arith.divf %138, %139 : vector<8x128xf32>
    %141 = arith.index_cast %c5_i32 : i32 to index
    %c0_78 = arith.constant 0 : index
    %c0_79 = arith.constant 0 : index
    %142 = vector.load %arg6[%141, %c0_78, %c0_79] : memref<16x8x128xf32, #tpu.memory_space<vmem>>, vector<1x8x128xf32>
    %143 = vector.shape_cast %142 : vector<1x8x128xf32> to vector<8x128xf32>
    %144 = vector.shape_cast %140 : vector<8x128xf32> to vector<1x8x128xf32>
    tpu.vector_store %arg6[%141, %c0_78, %c0_79], %144 {strides = array<i32>} : memref<16x8x128xf32, #tpu.memory_space<vmem>>, vector<1x8x128xf32>,
    %cst_80 = arith.constant 1.000000e+00 : f32
    %145 = vector.broadcast %cst_80 : f32 to vector<8x128xf32>
    %146 = arith.subf %145, %140 : vector<8x128xf32>
    %147 = arith.mulf %132, %146 : vector<8x128xf32>
    %c0_81 = arith.constant 0 : index
    %c0_82 = arith.constant 0 : index
    %148 = vector.load %arg9[%c0_81, %c0_82] : memref<8x128xf32, #tpu.memory_space<vmem>>, vector<8x128xf32>
    tpu.vector_store %arg9[%c0_81, %c0_82], %147 {strides = array<i32>} : memref<8x128xf32, #tpu.memory_space<vmem>>, vector<8x128xf32>,
    %c6_i32 = arith.constant 6 : i32
    %c0_83 = arith.constant 0 : index
    %c0_84 = arith.constant 0 : index
    %149 = vector.load %arg9[%c0_83, %c0_84] : memref<8x128xf32, #tpu.memory_space<vmem>>, vector<8x128xf32>
    %150 = arith.mulf %149, %11 : vector<8x128xf32>
    %151 = arith.index_cast %c6_i32 : i32 to index
    %c0_85 = arith.constant 0 : index
    %c0_86 = arith.constant 0 : index
    %152 = vector.load %arg8[%151, %c0_85, %c0_86] : memref<16x8x128xf32, #tpu.memory_space<vmem>>, vector<1x8x128xf32>
    %153 = vector.shape_cast %152 : vector<1x8x128xf32> to vector<8x128xf32>
    %154 = arith.addf %150, %153 : vector<8x128xf32>
    %155 = arith.subf %154, %14 : vector<8x128xf32>
    %cst_87 = arith.constant 5.000000e+00 : f32
    %156 = vector.broadcast %cst_87 : f32 to vector<8x128xf32>
    %157 = arith.mulf %156, %155 : vector<8x128xf32>
    %158 = arith.negf %157 : vector<8x128xf32>
    %159 = math.exp %158 : vector<8x128xf32>
    %cst_88 = arith.constant 1.000000e+00 : f32
    %160 = vector.broadcast %cst_88 : f32 to vector<8x128xf32>
    %161 = arith.addf %160, %159 : vector<8x128xf32>
    %162 = arith.divf %160, %161 : vector<8x128xf32>
    %163 = arith.index_cast %c6_i32 : i32 to index
    %c0_89 = arith.constant 0 : index
    %c0_90 = arith.constant 0 : index
    %164 = vector.load %arg6[%163, %c0_89, %c0_90] : memref<16x8x128xf32, #tpu.memory_space<vmem>>, vector<1x8x128xf32>
    %165 = vector.shape_cast %164 : vector<1x8x128xf32> to vector<8x128xf32>
    %166 = vector.shape_cast %162 : vector<8x128xf32> to vector<1x8x128xf32>
    tpu.vector_store %arg6[%163, %c0_89, %c0_90], %166 {strides = array<i32>} : memref<16x8x128xf32, #tpu.memory_space<vmem>>, vector<1x8x128xf32>,
    %cst_91 = arith.constant 1.000000e+00 : f32
    %167 = vector.broadcast %cst_91 : f32 to vector<8x128xf32>
    %168 = arith.subf %167, %162 : vector<8x128xf32>
    %169 = arith.mulf %154, %168 : vector<8x128xf32>
    %c0_92 = arith.constant 0 : index
    %c0_93 = arith.constant 0 : index
    %170 = vector.load %arg9[%c0_92, %c0_93] : memref<8x128xf32, #tpu.memory_space<vmem>>, vector<8x128xf32>
    tpu.vector_store %arg9[%c0_92, %c0_93], %169 {strides = array<i32>} : memref<8x128xf32, #tpu.memory_space<vmem>>, vector<8x128xf32>,
    %c7_i32 = arith.constant 7 : i32
    %c0_94 = arith.constant 0 : index
    %c0_95 = arith.constant 0 : index
    %171 = vector.load %arg9[%c0_94, %c0_95] : memref<8x128xf32, #tpu.memory_space<vmem>>, vector<8x128xf32>
    %172 = arith.mulf %171, %11 : vector<8x128xf32>
    %173 = arith.index_cast %c7_i32 : i32 to index
    %c0_96 = arith.constant 0 : index
    %c0_97 = arith.constant 0 : index
    %174 = vector.load %arg8[%173, %c0_96, %c0_97] : memref<16x8x128xf32, #tpu.memory_space<vmem>>, vector<1x8x128xf32>
    %175 = vector.shape_cast %174 : vector<1x8x128xf32> to vector<8x128xf32>
    %176 = arith.addf %172, %175 : vector<8x128xf32>
    %177 = arith.subf %176, %14 : vector<8x128xf32>
    %cst_98 = arith.constant 5.000000e+00 : f32
    %178 = vector.broadcast %cst_98 : f32 to vector<8x128xf32>
    %179 = arith.mulf %178, %177 : vector<8x128xf32>
    %180 = arith.negf %179 : vector<8x128xf32>
    %181 = math.exp %180 : vector<8x128xf32>
    %cst_99 = arith.constant 1.000000e+00 : f32
    %182 = vector.broadcast %cst_99 : f32 to vector<8x128xf32>
    %183 = arith.addf %182, %181 : vector<8x128xf32>
    %184 = arith.divf %182, %183 : vector<8x128xf32>
    %185 = arith.index_cast %c7_i32 : i32 to index
    %c0_100 = arith.constant 0 : index
    %c0_101 = arith.constant 0 : index
    %186 = vector.load %arg6[%185, %c0_100, %c0_101] : memref<16x8x128xf32, #tpu.memory_space<vmem>>, vector<1x8x128xf32>
    %187 = vector.shape_cast %186 : vector<1x8x128xf32> to vector<8x128xf32>
    %188 = vector.shape_cast %184 : vector<8x128xf32> to vector<1x8x128xf32>
    tpu.vector_store %arg6[%185, %c0_100, %c0_101], %188 {strides = array<i32>} : memref<16x8x128xf32, #tpu.memory_space<vmem>>, vector<1x8x128xf32>,
    %cst_102 = arith.constant 1.000000e+00 : f32
    %189 = vector.broadcast %cst_102 : f32 to vector<8x128xf32>
    %190 = arith.subf %189, %184 : vector<8x128xf32>
    %191 = arith.mulf %176, %190 : vector<8x128xf32>
    %c0_103 = arith.constant 0 : index
    %c0_104 = arith.constant 0 : index
    %192 = vector.load %arg9[%c0_103, %c0_104] : memref<8x128xf32, #tpu.memory_space<vmem>>, vector<8x128xf32>
    tpu.vector_store %arg9[%c0_103, %c0_104], %191 {strides = array<i32>} : memref<8x128xf32, #tpu.memory_space<vmem>>, vector<8x128xf32>,
    %c8_i32 = arith.constant 8 : i32
    %c0_105 = arith.constant 0 : index
    %c0_106 = arith.constant 0 : index
    %193 = vector.load %arg9[%c0_105, %c0_106] : memref<8x128xf32, #tpu.memory_space<vmem>>, vector<8x128xf32>
    %194 = arith.mulf %193, %11 : vector<8x128xf32>
    %195 = arith.index_cast %c8_i32 : i32 to index
    %c0_107 = arith.constant 0 : index
    %c0_108 = arith.constant 0 : index
    %196 = vector.load %arg8[%195, %c0_107, %c0_108] : memref<16x8x128xf32, #tpu.memory_space<vmem>>, vector<1x8x128xf32>
    %197 = vector.shape_cast %196 : vector<1x8x128xf32> to vector<8x128xf32>
    %198 = arith.addf %194, %197 : vector<8x128xf32>
    %199 = arith.subf %198, %14 : vector<8x128xf32>
    %cst_109 = arith.constant 5.000000e+00 : f32
    %200 = vector.broadcast %cst_109 : f32 to vector<8x128xf32>
    %201 = arith.mulf %200, %199 : vector<8x128xf32>
    %202 = arith.negf %201 : vector<8x128xf32>
    %203 = math.exp %202 : vector<8x128xf32>
    %cst_110 = arith.constant 1.000000e+00 : f32
    %204 = vector.broadcast %cst_110 : f32 to vector<8x128xf32>
    %205 = arith.addf %204, %203 : vector<8x128xf32>
    %206 = arith.divf %204, %205 : vector<8x128xf32>
    %207 = arith.index_cast %c8_i32 : i32 to index
    %c0_111 = arith.constant 0 : index
    %c0_112 = arith.constant 0 : index
    %208 = vector.load %arg6[%207, %c0_111, %c0_112] : memref<16x8x128xf32, #tpu.memory_space<vmem>>, vector<1x8x128xf32>
    %209 = vector.shape_cast %208 : vector<1x8x128xf32> to vector<8x128xf32>
    %210 = vector.shape_cast %206 : vector<8x128xf32> to vector<1x8x128xf32>
    tpu.vector_store %arg6[%207, %c0_111, %c0_112], %210 {strides = array<i32>} : memref<16x8x128xf32, #tpu.memory_space<vmem>>, vector<1x8x128xf32>,
    %cst_113 = arith.constant 1.000000e+00 : f32
    %211 = vector.broadcast %cst_113 : f32 to vector<8x128xf32>
    %212 = arith.subf %211, %206 : vector<8x128xf32>
    %213 = arith.mulf %198, %212 : vector<8x128xf32>
    %c0_114 = arith.constant 0 : index
    %c0_115 = arith.constant 0 : index
    %214 = vector.load %arg9[%c0_114, %c0_115] : memref<8x128xf32, #tpu.memory_space<vmem>>, vector<8x128xf32>
    tpu.vector_store %arg9[%c0_114, %c0_115], %213 {strides = array<i32>} : memref<8x128xf32, #tpu.memory_space<vmem>>, vector<8x128xf32>,
    %c9_i32 = arith.constant 9 : i32
    %c0_116 = arith.constant 0 : index
    %c0_117 = arith.constant 0 : index
    %215 = vector.load %arg9[%c0_116, %c0_117] : memref<8x128xf32, #tpu.memory_space<vmem>>, vector<8x128xf32>
    %216 = arith.mulf %215, %11 : vector<8x128xf32>
    %217 = arith.index_cast %c9_i32 : i32 to index
    %c0_118 = arith.constant 0 : index
    %c0_119 = arith.constant 0 : index
    %218 = vector.load %arg8[%217, %c0_118, %c0_119] : memref<16x8x128xf32, #tpu.memory_space<vmem>>, vector<1x8x128xf32>
    %219 = vector.shape_cast %218 : vector<1x8x128xf32> to vector<8x128xf32>
    %220 = arith.addf %216, %219 : vector<8x128xf32>
    %221 = arith.subf %220, %14 : vector<8x128xf32>
    %cst_120 = arith.constant 5.000000e+00 : f32
    %222 = vector.broadcast %cst_120 : f32 to vector<8x128xf32>
    %223 = arith.mulf %222, %221 : vector<8x128xf32>
    %224 = arith.negf %223 : vector<8x128xf32>
    %225 = math.exp %224 : vector<8x128xf32>
    %cst_121 = arith.constant 1.000000e+00 : f32
    %226 = vector.broadcast %cst_121 : f32 to vector<8x128xf32>
    %227 = arith.addf %226, %225 : vector<8x128xf32>
    %228 = arith.divf %226, %227 : vector<8x128xf32>
    %229 = arith.index_cast %c9_i32 : i32 to index
    %c0_122 = arith.constant 0 : index
    %c0_123 = arith.constant 0 : index
    %230 = vector.load %arg6[%229, %c0_122, %c0_123] : memref<16x8x128xf32, #tpu.memory_space<vmem>>, vector<1x8x128xf32>
    %231 = vector.shape_cast %230 : vector<1x8x128xf32> to vector<8x128xf32>
    %232 = vector.shape_cast %228 : vector<8x128xf32> to vector<1x8x128xf32>
    tpu.vector_store %arg6[%229, %c0_122, %c0_123], %232 {strides = array<i32>} : memref<16x8x128xf32, #tpu.memory_space<vmem>>, vector<1x8x128xf32>,
    %cst_124 = arith.constant 1.000000e+00 : f32
    %233 = vector.broadcast %cst_124 : f32 to vector<8x128xf32>
    %234 = arith.subf %233, %228 : vector<8x128xf32>
    %235 = arith.mulf %220, %234 : vector<8x128xf32>
    %c0_125 = arith.constant 0 : index
    %c0_126 = arith.constant 0 : index
    %236 = vector.load %arg9[%c0_125, %c0_126] : memref<8x128xf32, #tpu.memory_space<vmem>>, vector<8x128xf32>
    tpu.vector_store %arg9[%c0_125, %c0_126], %235 {strides = array<i32>} : memref<8x128xf32, #tpu.memory_space<vmem>>, vector<8x128xf32>,
    %c10_i32 = arith.constant 10 : i32
    %c0_127 = arith.constant 0 : index
    %c0_128 = arith.constant 0 : index
    %237 = vector.load %arg9[%c0_127, %c0_128] : memref<8x128xf32, #tpu.memory_space<vmem>>, vector<8x128xf32>
    %238 = arith.mulf %237, %11 : vector<8x128xf32>
    %239 = arith.index_cast %c10_i32 : i32 to index
    %c0_129 = arith.constant 0 : index
    %c0_130 = arith.constant 0 : index
    %240 = vector.load %arg8[%239, %c0_129, %c0_130] : memref<16x8x128xf32, #tpu.memory_space<vmem>>, vector<1x8x128xf32>
    %241 = vector.shape_cast %240 : vector<1x8x128xf32> to vector<8x128xf32>
    %242 = arith.addf %238, %241 : vector<8x128xf32>
    %243 = arith.subf %242, %14 : vector<8x128xf32>
    %cst_131 = arith.constant 5.000000e+00 : f32
    %244 = vector.broadcast %cst_131 : f32 to vector<8x128xf32>
    %245 = arith.mulf %244, %243 : vector<8x128xf32>
    %246 = arith.negf %245 : vector<8x128xf32>
    %247 = math.exp %246 : vector<8x128xf32>
    %cst_132 = arith.constant 1.000000e+00 : f32
    %248 = vector.broadcast %cst_132 : f32 to vector<8x128xf32>
    %249 = arith.addf %248, %247 : vector<8x128xf32>
    %250 = arith.divf %248, %249 : vector<8x128xf32>
    %251 = arith.index_cast %c10_i32 : i32 to index
    %c0_133 = arith.constant 0 : index
    %c0_134 = arith.constant 0 : index
    %252 = vector.load %arg6[%251, %c0_133, %c0_134] : memref<16x8x128xf32, #tpu.memory_space<vmem>>, vector<1x8x128xf32>
    %253 = vector.shape_cast %252 : vector<1x8x128xf32> to vector<8x128xf32>
    %254 = vector.shape_cast %250 : vector<8x128xf32> to vector<1x8x128xf32>
    tpu.vector_store %arg6[%251, %c0_133, %c0_134], %254 {strides = array<i32>} : memref<16x8x128xf32, #tpu.memory_space<vmem>>, vector<1x8x128xf32>,
    %cst_135 = arith.constant 1.000000e+00 : f32
    %255 = vector.broadcast %cst_135 : f32 to vector<8x128xf32>
    %256 = arith.subf %255, %250 : vector<8x128xf32>
    %257 = arith.mulf %242, %256 : vector<8x128xf32>
    %c0_136 = arith.constant 0 : index
    %c0_137 = arith.constant 0 : index
    %258 = vector.load %arg9[%c0_136, %c0_137] : memref<8x128xf32, #tpu.memory_space<vmem>>, vector<8x128xf32>
    tpu.vector_store %arg9[%c0_136, %c0_137], %257 {strides = array<i32>} : memref<8x128xf32, #tpu.memory_space<vmem>>, vector<8x128xf32>,
    %c11_i32 = arith.constant 11 : i32
    %c0_138 = arith.constant 0 : index
    %c0_139 = arith.constant 0 : index
    %259 = vector.load %arg9[%c0_138, %c0_139] : memref<8x128xf32, #tpu.memory_space<vmem>>, vector<8x128xf32>
    %260 = arith.mulf %259, %11 : vector<8x128xf32>
    %261 = arith.index_cast %c11_i32 : i32 to index
    %c0_140 = arith.constant 0 : index
    %c0_141 = arith.constant 0 : index
    %262 = vector.load %arg8[%261, %c0_140, %c0_141] : memref<16x8x128xf32, #tpu.memory_space<vmem>>, vector<1x8x128xf32>
    %263 = vector.shape_cast %262 : vector<1x8x128xf32> to vector<8x128xf32>
    %264 = arith.addf %260, %263 : vector<8x128xf32>
    %265 = arith.subf %264, %14 : vector<8x128xf32>
    %cst_142 = arith.constant 5.000000e+00 : f32
    %266 = vector.broadcast %cst_142 : f32 to vector<8x128xf32>
    %267 = arith.mulf %266, %265 : vector<8x128xf32>
    %268 = arith.negf %267 : vector<8x128xf32>
    %269 = math.exp %268 : vector<8x128xf32>
    %cst_143 = arith.constant 1.000000e+00 : f32
    %270 = vector.broadcast %cst_143 : f32 to vector<8x128xf32>
    %271 = arith.addf %270, %269 : vector<8x128xf32>
    %272 = arith.divf %270, %271 : vector<8x128xf32>
    %273 = arith.index_cast %c11_i32 : i32 to index
    %c0_144 = arith.constant 0 : index
    %c0_145 = arith.constant 0 : index
    %274 = vector.load %arg6[%273, %c0_144, %c0_145] : memref<16x8x128xf32, #tpu.memory_space<vmem>>, vector<1x8x128xf32>
    %275 = vector.shape_cast %274 : vector<1x8x128xf32> to vector<8x128xf32>
    %276 = vector.shape_cast %272 : vector<8x128xf32> to vector<1x8x128xf32>
    tpu.vector_store %arg6[%273, %c0_144, %c0_145], %276 {strides = array<i32>} : memref<16x8x128xf32, #tpu.memory_space<vmem>>, vector<1x8x128xf32>,
    %cst_146 = arith.constant 1.000000e+00 : f32
    %277 = vector.broadcast %cst_146 : f32 to vector<8x128xf32>
    %278 = arith.subf %277, %272 : vector<8x128xf32>
    %279 = arith.mulf %264, %278 : vector<8x128xf32>
    %c0_147 = arith.constant 0 : index
    %c0_148 = arith.constant 0 : index
    %280 = vector.load %arg9[%c0_147, %c0_148] : memref<8x128xf32, #tpu.memory_space<vmem>>, vector<8x128xf32>
    tpu.vector_store %arg9[%c0_147, %c0_148], %279 {strides = array<i32>} : memref<8x128xf32, #tpu.memory_space<vmem>>, vector<8x128xf32>,
    %c12_i32 = arith.constant 12 : i32
    %c0_149 = arith.constant 0 : index
    %c0_150 = arith.constant 0 : index
    %281 = vector.load %arg9[%c0_149, %c0_150] : memref<8x128xf32, #tpu.memory_space<vmem>>, vector<8x128xf32>
    %282 = arith.mulf %281, %11 : vector<8x128xf32>
    %283 = arith.index_cast %c12_i32 : i32 to index
    %c0_151 = arith.constant 0 : index
    %c0_152 = arith.constant 0 : index
    %284 = vector.load %arg8[%283, %c0_151, %c0_152] : memref<16x8x128xf32, #tpu.memory_space<vmem>>, vector<1x8x128xf32>
    %285 = vector.shape_cast %284 : vector<1x8x128xf32> to vector<8x128xf32>
    %286 = arith.addf %282, %285 : vector<8x128xf32>
    %287 = arith.subf %286, %14 : vector<8x128xf32>
    %cst_153 = arith.constant 5.000000e+00 : f32
    %288 = vector.broadcast %cst_153 : f32 to vector<8x128xf32>
    %289 = arith.mulf %288, %287 : vector<8x128xf32>
    %290 = arith.negf %289 : vector<8x128xf32>
    %291 = math.exp %290 : vector<8x128xf32>
    %cst_154 = arith.constant 1.000000e+00 : f32
    %292 = vector.broadcast %cst_154 : f32 to vector<8x128xf32>
    %293 = arith.addf %292, %291 : vector<8x128xf32>
    %294 = arith.divf %292, %293 : vector<8x128xf32>
    %295 = arith.index_cast %c12_i32 : i32 to index
    %c0_155 = arith.constant 0 : index
    %c0_156 = arith.constant 0 : index
    %296 = vector.load %arg6[%295, %c0_155, %c0_156] : memref<16x8x128xf32, #tpu.memory_space<vmem>>, vector<1x8x128xf32>
    %297 = vector.shape_cast %296 : vector<1x8x128xf32> to vector<8x128xf32>
    %298 = vector.shape_cast %294 : vector<8x128xf32> to vector<1x8x128xf32>
    tpu.vector_store %arg6[%295, %c0_155, %c0_156], %298 {strides = array<i32>} : memref<16x8x128xf32, #tpu.memory_space<vmem>>, vector<1x8x128xf32>,
    %cst_157 = arith.constant 1.000000e+00 : f32
    %299 = vector.broadcast %cst_157 : f32 to vector<8x128xf32>
    %300 = arith.subf %299, %294 : vector<8x128xf32>
    %301 = arith.mulf %286, %300 : vector<8x128xf32>
    %c0_158 = arith.constant 0 : index
    %c0_159 = arith.constant 0 : index
    %302 = vector.load %arg9[%c0_158, %c0_159] : memref<8x128xf32, #tpu.memory_space<vmem>>, vector<8x128xf32>
    tpu.vector_store %arg9[%c0_158, %c0_159], %301 {strides = array<i32>} : memref<8x128xf32, #tpu.memory_space<vmem>>, vector<8x128xf32>,
    %c13_i32 = arith.constant 13 : i32
    %c0_160 = arith.constant 0 : index
    %c0_161 = arith.constant 0 : index
    %303 = vector.load %arg9[%c0_160, %c0_161] : memref<8x128xf32, #tpu.memory_space<vmem>>, vector<8x128xf32>
    %304 = arith.mulf %303, %11 : vector<8x128xf32>
    %305 = arith.index_cast %c13_i32 : i32 to index
    %c0_162 = arith.constant 0 : index
    %c0_163 = arith.constant 0 : index
    %306 = vector.load %arg8[%305, %c0_162, %c0_163] : memref<16x8x128xf32, #tpu.memory_space<vmem>>, vector<1x8x128xf32>
    %307 = vector.shape_cast %306 : vector<1x8x128xf32> to vector<8x128xf32>
    %308 = arith.addf %304, %307 : vector<8x128xf32>
    %309 = arith.subf %308, %14 : vector<8x128xf32>
    %cst_164 = arith.constant 5.000000e+00 : f32
    %310 = vector.broadcast %cst_164 : f32 to vector<8x128xf32>
    %311 = arith.mulf %310, %309 : vector<8x128xf32>
    %312 = arith.negf %311 : vector<8x128xf32>
    %313 = math.exp %312 : vector<8x128xf32>
    %cst_165 = arith.constant 1.000000e+00 : f32
    %314 = vector.broadcast %cst_165 : f32 to vector<8x128xf32>
    %315 = arith.addf %314, %313 : vector<8x128xf32>
    %316 = arith.divf %314, %315 : vector<8x128xf32>
    %317 = arith.index_cast %c13_i32 : i32 to index
    %c0_166 = arith.constant 0 : index
    %c0_167 = arith.constant 0 : index
    %318 = vector.load %arg6[%317, %c0_166, %c0_167] : memref<16x8x128xf32, #tpu.memory_space<vmem>>, vector<1x8x128xf32>
    %319 = vector.shape_cast %318 : vector<1x8x128xf32> to vector<8x128xf32>
    %320 = vector.shape_cast %316 : vector<8x128xf32> to vector<1x8x128xf32>
    tpu.vector_store %arg6[%317, %c0_166, %c0_167], %320 {strides = array<i32>} : memref<16x8x128xf32, #tpu.memory_space<vmem>>, vector<1x8x128xf32>,
    %cst_168 = arith.constant 1.000000e+00 : f32
    %321 = vector.broadcast %cst_168 : f32 to vector<8x128xf32>
    %322 = arith.subf %321, %316 : vector<8x128xf32>
    %323 = arith.mulf %308, %322 : vector<8x128xf32>
    %c0_169 = arith.constant 0 : index
    %c0_170 = arith.constant 0 : index
    %324 = vector.load %arg9[%c0_169, %c0_170] : memref<8x128xf32, #tpu.memory_space<vmem>>, vector<8x128xf32>
    tpu.vector_store %arg9[%c0_169, %c0_170], %323 {strides = array<i32>} : memref<8x128xf32, #tpu.memory_space<vmem>>, vector<8x128xf32>,
    %c14_i32 = arith.constant 14 : i32
    %c0_171 = arith.constant 0 : index
    %c0_172 = arith.constant 0 : index
    %325 = vector.load %arg9[%c0_171, %c0_172] : memref<8x128xf32, #tpu.memory_space<vmem>>, vector<8x128xf32>
    %326 = arith.mulf %325, %11 : vector<8x128xf32>
    %327 = arith.index_cast %c14_i32 : i32 to index
    %c0_173 = arith.constant 0 : index
    %c0_174 = arith.constant 0 : index
    %328 = vector.load %arg8[%327, %c0_173, %c0_174] : memref<16x8x128xf32, #tpu.memory_space<vmem>>, vector<1x8x128xf32>
    %329 = vector.shape_cast %328 : vector<1x8x128xf32> to vector<8x128xf32>
    %330 = arith.addf %326, %329 : vector<8x128xf32>
    %331 = arith.subf %330, %14 : vector<8x128xf32>
    %cst_175 = arith.constant 5.000000e+00 : f32
    %332 = vector.broadcast %cst_175 : f32 to vector<8x128xf32>
    %333 = arith.mulf %332, %331 : vector<8x128xf32>
    %334 = arith.negf %333 : vector<8x128xf32>
    %335 = math.exp %334 : vector<8x128xf32>
    %cst_176 = arith.constant 1.000000e+00 : f32
    %336 = vector.broadcast %cst_176 : f32 to vector<8x128xf32>
    %337 = arith.addf %336, %335 : vector<8x128xf32>
    %338 = arith.divf %336, %337 : vector<8x128xf32>
    %339 = arith.index_cast %c14_i32 : i32 to index
    %c0_177 = arith.constant 0 : index
    %c0_178 = arith.constant 0 : index
    %340 = vector.load %arg6[%339, %c0_177, %c0_178] : memref<16x8x128xf32, #tpu.memory_space<vmem>>, vector<1x8x128xf32>
    %341 = vector.shape_cast %340 : vector<1x8x128xf32> to vector<8x128xf32>
    %342 = vector.shape_cast %338 : vector<8x128xf32> to vector<1x8x128xf32>
    tpu.vector_store %arg6[%339, %c0_177, %c0_178], %342 {strides = array<i32>} : memref<16x8x128xf32, #tpu.memory_space<vmem>>, vector<1x8x128xf32>,
    %cst_179 = arith.constant 1.000000e+00 : f32
    %343 = vector.broadcast %cst_179 : f32 to vector<8x128xf32>
    %344 = arith.subf %343, %338 : vector<8x128xf32>
    %345 = arith.mulf %330, %344 : vector<8x128xf32>
    %c0_180 = arith.constant 0 : index
    %c0_181 = arith.constant 0 : index
    %346 = vector.load %arg9[%c0_180, %c0_181] : memref<8x128xf32, #tpu.memory_space<vmem>>, vector<8x128xf32>
    tpu.vector_store %arg9[%c0_180, %c0_181], %345 {strides = array<i32>} : memref<8x128xf32, #tpu.memory_space<vmem>>, vector<8x128xf32>,
    %c15_i32 = arith.constant 15 : i32
    %c0_182 = arith.constant 0 : index
    %c0_183 = arith.constant 0 : index
    %347 = vector.load %arg9[%c0_182, %c0_183] : memref<8x128xf32, #tpu.memory_space<vmem>>, vector<8x128xf32>
    %348 = arith.mulf %347, %11 : vector<8x128xf32>
    %349 = arith.index_cast %c15_i32 : i32 to index
    %c0_184 = arith.constant 0 : index
    %c0_185 = arith.constant 0 : index
    %350 = vector.load %arg8[%349, %c0_184, %c0_185] : memref<16x8x128xf32, #tpu.memory_space<vmem>>, vector<1x8x128xf32>
    %351 = vector.shape_cast %350 : vector<1x8x128xf32> to vector<8x128xf32>
    %352 = arith.addf %348, %351 : vector<8x128xf32>
    %353 = arith.subf %352, %14 : vector<8x128xf32>
    %cst_186 = arith.constant 5.000000e+00 : f32
    %354 = vector.broadcast %cst_186 : f32 to vector<8x128xf32>
    %355 = arith.mulf %354, %353 : vector<8x128xf32>
    %356 = arith.negf %355 : vector<8x128xf32>
    %357 = math.exp %356 : vector<8x128xf32>
    %cst_187 = arith.constant 1.000000e+00 : f32
    %358 = vector.broadcast %cst_187 : f32 to vector<8x128xf32>
    %359 = arith.addf %358, %357 : vector<8x128xf32>
    %360 = arith.divf %358, %359 : vector<8x128xf32>
    %361 = arith.index_cast %c15_i32 : i32 to index
    %c0_188 = arith.constant 0 : index
    %c0_189 = arith.constant 0 : index
    %362 = vector.load %arg6[%361, %c0_188, %c0_189] : memref<16x8x128xf32, #tpu.memory_space<vmem>>, vector<1x8x128xf32>
    %363 = vector.shape_cast %362 : vector<1x8x128xf32> to vector<8x128xf32>
    %364 = vector.shape_cast %360 : vector<8x128xf32> to vector<1x8x128xf32>
    tpu.vector_store %arg6[%361, %c0_188, %c0_189], %364 {strides = array<i32>} : memref<16x8x128xf32, #tpu.memory_space<vmem>>, vector<1x8x128xf32>,
    %cst_190 = arith.constant 1.000000e+00 : f32
    %365 = vector.broadcast %cst_190 : f32 to vector<8x128xf32>
    %366 = arith.subf %365, %360 : vector<8x128xf32>
    %367 = arith.mulf %352, %366 : vector<8x128xf32>
    %c0_191 = arith.constant 0 : index
    %c0_192 = arith.constant 0 : index
    %368 = vector.load %arg9[%c0_191, %c0_192] : memref<8x128xf32, #tpu.memory_space<vmem>>, vector<8x128xf32>
    tpu.vector_store %arg9[%c0_191, %c0_192], %367 {strides = array<i32>} : memref<8x128xf32, #tpu.memory_space<vmem>>, vector<8x128xf32>,
    %c16_i32 = arith.constant 16 : i32
    %c0_193 = arith.constant 0 : index
    %c0_194 = arith.constant 0 : index
    %369 = vector.load %arg9[%c0_193, %c0_194] : memref<8x128xf32, #tpu.memory_space<vmem>>, vector<8x128xf32>
    %c0_195 = arith.constant 0 : index
    %c0_196 = arith.constant 0 : index
    %370 = vector.load %arg7[%c0_195, %c0_196] : memref<8x128xf32, #tpu.memory_space<vmem>>, vector<8x128xf32>
    tpu.vector_store %arg7[%c0_195, %c0_196], %369 {strides = array<i32>} : memref<8x128xf32, #tpu.memory_space<vmem>>, vector<8x128xf32>,
    return
  }
}

</mosaic_0001>

<llo_original>
// kernel: lif_forward_sequence.1
$region0: #{lif_forward_sequence.1}
  #allocation0 [shape = 'u32[]', space=smem, size = 0x4, offset = 0x4, fixed_abs, tag = 'smem constant byte address 0x4 - core index']
  #allocation1 [shape = 'u32[144,128]{1,0:T(1,128)}', space=vmem, size = 0x12000, scoped, tag = 'internal scratch']
  #allocation2 [shape = 'f32[16,8,128]{2,1,0:T(8,128)}', space=vmem, size = 0x10000, scoped, tag = 'scratch operand']
  #allocation3 [shape = 'f32[8,128]{1,0:T(8,128)}', space=vmem, size = 0x1000, scoped, tag = 'scratch operand']
  %s0 = inlined_call_operand.vmem [shape: bf16[16,8,64], index: 0, kind: input, shape index: {}]
  %s1 = inlined_call_operand.vmem [shape: bf16[128,64], index: 1, kind: input, shape index: {}]
  %s2 = inlined_call_operand.vmem [shape: f32[1,128], index: 2, kind: input, shape index: {}]
  %s3 = inlined_call_operand.vmem [shape: f32[1,128], index: 3, kind: input, shape index: {}]
  %s4 = inlined_call_operand.vmem [shape: f32[1,128], index: 4, kind: input, shape index: {}]
  %s5 = inlined_call_operand.hbm [shape: f32[8,128], index: 5, kind: input, shape index: {}, may-alias: {5,7}]
  %s6 = inlined_call_operand.hbm [shape: f32[16,8,128], index: 6, kind: output, shape index: {0}]
  %s7 = inlined_call_operand.hbm [shape: f32[8,128], index: 7, kind: output, shape index: {1}, may-alias: {5,7}]
  %8 = xla_tuple %s6, %s7
  %s9 = sld [smem:[#allocation0]]
  $region46: #{lif_forward_sequence.1} parent=0
    _
  %s11 = ssub.s32 1, %s9
  %s12 = scalar_select 0, %s11, %s9
  $region1: #{lif_forward_sequence.1} parent=0
    #allocation4 [shape = 'u8[4096]{0}', space=vmem, size = 0x1000, scoped, tag = 'input window, operand 5, single buffered']
    #allocation5 [shape = 's32[1]{0}', space=sflag, size = 0x4, scoped, tag = 'scoped memory for lif_forward_sequence.1']
    #allocation6 [shape = 's32[1]{0}', space=sflag, size = 0x4, scoped, tag = 'scoped memory for lif_forward_sequence.1']
    #allocation7 [shape = 'u8[65536]{0}', space=vmem, size = 0x10000, scoped, tag = 'output window, operand 0, single buffered']
    #allocation8 [shape = 'u8[4096]{0}', space=vmem, size = 0x1000, scoped, tag = 'output window, operand 1, single buffered']
    #allocation9 [shape = 's32[1]{0}', space=sflag, size = 0x4, scoped, tag = 'scoped memory for lif_forward_sequence.1']
    %13 = vsyncpa [#allocation5], 0
    %14 = vsyncpa [#allocation6], 0
    %15 = vsyncpa [#allocation9], 0
    // Predicated region
    $region2: #{lif_forward_sequence.1} parent=1 // pred_check
      _
    $region3: #{lif_forward_sequence.1} parent=1 // pred_check_branch
      %17 = sbr.rel (0) target = $region5
    $region4: #{lif_forward_sequence.1} parent=1 // pred_region
      _
    $region5: #{lif_forward_sequence.1} parent=1 // pred_fallthru
      _
    // Predicated region
    $region6: #{lif_forward_sequence.1} parent=1 // pred_check
      _
    $region7: #{lif_forward_sequence.1} parent=1 // pred_check_branch
      %19 = sbr.rel (0) target = $region9
    $region8: #{lif_forward_sequence.1} parent=1 // pred_region
      _
    $region9: #{lif_forward_sequence.1} parent=1 // pred_fallthru
      _
    // Predicated region
    $region10: #{lif_forward_sequence.1} parent=1 // pred_check
      _
    $region11: #{lif_forward_sequence.1} parent=1 // pred_check_branch
      %21 = sbr.rel (0) target = $region13
    $region12: #{lif_forward_sequence.1} parent=1 // pred_region
      _
    $region13: #{lif_forward_sequence.1} parent=1 // pred_fallthru
      _
    // Predicated region
    $region14: #{lif_forward_sequence.1} parent=1 // pred_check
      _
    $region15: #{lif_forward_sequence.1} parent=1 // pred_check_branch
      %23 = sbr.rel (0) target = $region17
    $region16: #{lif_forward_sequence.1} parent=1 // pred_region
      _
    $region17: #{lif_forward_sequence.1} parent=1 // pred_fallthru
      _
    // Predicated region
    $region18: #{lif_forward_sequence.1} parent=1 // pred_check
      _
    $region19: #{lif_forward_sequence.1} parent=1 // pred_check_branch
      %25 = sbr.rel (0) target = $region21
    $region20: #{lif_forward_sequence.1} parent=1 // pred_region
      _
    $region21: #{lif_forward_sequence.1} parent=1 // pred_fallthru
      _
    // Predicated region
    $region22: #{lif_forward_sequence.1} parent=1 // pred_check
      _
    $region23: #{lif_forward_sequence.1} parent=1 // pred_check_branch
      %27 = sbr.rel (0) target = $region25
    $region24: #{lif_forward_sequence.1} parent=1 // pred_region
      %s29 = ssub.s32 128, 128
      %30 = vsyncadd [#allocation5], %s29
      %s32 = sshll.u32 [#allocation4], 4
      %s33 = int_to_ptr.vmem [resolvable:$true] %s32
      %35 = dma.hbm_to_vmem [thread:$0]  %s5, 128, %s33, [#allocation5]
    $region25: #{lif_forward_sequence.1} parent=1 // pred_fallthru
      _
    // Predicated region
    $region26: #{lif_forward_sequence.1} parent=1 // pred_check
      _
    $region27: #{lif_forward_sequence.1} parent=1 // pred_check_branch
      %37 = sbr.rel (0) target = $region29
    $region28: #{lif_forward_sequence.1} parent=1 // pred_region
      %38 = dma.done [#allocation5], 128
    $region29: #{lif_forward_sequence.1} parent=1 // pred_fallthru
      _
    %v40 = vld [vmem:[%s0] sm:$0xf]
    %v41 = vld [vmem:[%s0 + $0x4] sm:$0xf]
    %v42 = vld [vmem:[%s0 + $0x8] sm:$0xf]
    %v43 = vld [vmem:[%s0 + $0xc] sm:$0xf]
    %v44 = vld [vmem:[%s0 + $0x10] sm:$0xf]
    %v45 = vld [vmem:[%s0 + $0x14] sm:$0xf]
    %v46 = vld [vmem:[%s0 + $0x18] sm:$0xf]
    %v47 = vld [vmem:[%s0 + $0x1c] sm:$0xf]
    %v48 = vld [vmem:[%s0 + $0x20] sm:$0xf]
    %v49 = vld [vmem:[%s0 + $0x24] sm:$0xf]
    %v50 = vld [vmem:[%s0 + $0x28] sm:$0xf]
    %v51 = vld [vmem:[%s0 + $0x2c] sm:$0xf]
    %v52 = vld [vmem:[%s0 + $0x30] sm:$0xf]
    %v53 = vld [vmem:[%s0 + $0x34] sm:$0xf]
    %v54 = vld [vmem:[%s0 + $0x38] sm:$0xf]
    %v55 = vld [vmem:[%s0 + $0x3c] sm:$0xf]
    %v56 = vld [vmem:[%s1] sm:$0xf]
    %v57 = vld [vmem:[%s1 + $0x4] sm:$0xf]
    %v58 = vld [vmem:[%s1 + $0x8] sm:$0xf]
    %v59 = vld [vmem:[%s1 + $0xc] sm:$0xf]
    %v60 = vld [vmem:[%s1 + $0x10] sm:$0xf]
    %v61 = vld [vmem:[%s1 + $0x14] sm:$0xf]
    %v62 = vld [vmem:[%s1 + $0x18] sm:$0xf]
    %v63 = vld [vmem:[%s1 + $0x1c] sm:$0xf]
    %v64 = vld [vmem:[%s1 + $0x20] sm:$0xf]
    %v65 = vld [vmem:[%s1 + $0x24] sm:$0xf]
    %v66 = vld [vmem:[%s1 + $0x28] sm:$0xf]
    %v67 = vld [vmem:[%s1 + $0x2c] sm:$0xf]
    %v68 = vld [vmem:[%s1 + $0x30] sm:$0xf]
    %v69 = vld [vmem:[%s1 + $0x34] sm:$0xf]
    %v70 = vld [vmem:[%s1 + $0x38] sm:$0xf]
    %v71 = vld [vmem:[%s1 + $0x3c] sm:$0xf]
    %v72 = vld [vmem:[%s2] sm:$0x1]
    %v74 = vlaneseq
    %v75 = vshrl.u32 %v74, 7
    %v76 = vsub.s32 0, %v75
    %v77 = vrot.slane %v72, %v76
    %v95 = vunpack.c.l.b16 %v40
    %v96 = vunpack.c.l.b16 %v41
    %v97 = vunpack.c.l.b16 %v42
    %v98 = vunpack.c.l.b16 %v43
    %v99 = vunpack.c.l.b16 %v44
    %v100 = vunpack.c.l.b16 %v45
    %v101 = vunpack.c.l.b16 %v46
    %v102 = vunpack.c.l.b16 %v47
    %v103 = vunpack.c.l.b16 %v48
    %v104 = vunpack.c.l.b16 %v49
    %v105 = vunpack.c.l.b16 %v50
    %v106 = vunpack.c.l.b16 %v51
    %v107 = vunpack.c.l.b16 %v52
    %v108 = vunpack.c.l.b16 %v53
    %v109 = vunpack.c.l.b16 %v54
    %v110 = vunpack.c.l.b16 %v55
    %v111 = vpack.c.b16 %v96, %v95
    %v112 = vpack.c.b16 %v98, %v97
    %v113 = vpack.c.b16 %v100, %v99
    %v114 = vpack.c.b16 %v102, %v101
    %v115 = vpack.c.b16 %v104, %v103
    %v116 = vpack.c.b16 %v106, %v105
    %v117 = vpack.c.b16 %v108, %v107
    %v118 = vpack.c.b16 %v110, %v109
    %v135 = vunpack.c.l.b16 %v56
    %v136 = vunpack.c.l.b16 %v57
    %v137 = vunpack.c.l.b16 %v58
    %v138 = vunpack.c.l.b16 %v59
    %v139 = vunpack.c.l.b16 %v60
    %v140 = vunpack.c.l.b16 %v61
    %v141 = vunpack.c.l.b16 %v62
    %v142 = vunpack.c.l.b16 %v63
    %v143 = vunpack.c.l.b16 %v64
    %v144 = vunpack.c.l.b16 %v65
    %v145 = vunpack.c.l.b16 %v66
    %v146 = vunpack.c.l.b16 %v67
    %v147 = vunpack.c.l.b16 %v68
    %v148 = vunpack.c.l.b16 %v69
    %v149 = vunpack.c.l.b16 %v70
    %v150 = vunpack.c.l.b16 %v71
    %v151 = vpack.c.b16 %v136, %v135
    %v152 = vpack.c.b16 %v138, %v137
    %v153 = vpack.c.b16 %v140, %v139
    %v154 = vpack.c.b16 %v142, %v141
    %v155 = vpack.c.b16 %v144, %v143
    %v156 = vpack.c.b16 %v146, %v145
    %v157 = vpack.c.b16 %v148, %v147
    %v158 = vpack.c.b16 %v150, %v149
    %vm159 = vcmask 523264
    %v161 = vsel %vm159, %v111, 0
    %v164 = vsel %vm159, %v112, 0
    %v167 = vsel %vm159, %v113, 0
    %v170 = vsel %vm159, %v114, 0
    %v173 = vsel %vm159, %v115, 0
    %v176 = vsel %vm159, %v116, 0
    %v179 = vsel %vm159, %v117, 0
    %v182 = vsel %vm159, %v118, 0
    %v185 = vsel %vm159, %v151, 0
    %v188 = vsel %vm159, %v152, 0
    %v191 = vsel %vm159, %v153, 0
    %v194 = vsel %vm159, %v154, 0
    %v197 = vsel %vm159, %v155, 0
    %v200 = vsel %vm159, %v156, 0
    %v203 = vsel %vm159, %v157, 0
    %v206 = vsel %vm159, %v158, 0
    %208 = vmatprep.subr.bf16.mxu0 0
    %209 = vmatpush1.bf16.xpose.msra.mxu0 %v185
    %210 = vmatprep.subr.bf16.mxu0 0
    %211 = vmatpush1.bf16.xpose.msra.mxu0 %v188
    %212 = vmatprep.subr.bf16.mxu0 0
    %213 = vmatpush1.bf16.xpose.msra.mxu0 %v191
    %214 = vmatprep.subr.bf16.mxu0 0
    %215 = vmatpush1.bf16.xpose.msra.mxu0 %v194
    %216 = vmatprep.subr.bf16.mxu0 0
    %217 = vmatpush1.bf16.xpose.msra.mxu0 %v197
    %218 = vmatprep.subr.bf16.mxu0 0
    %219 = vmatpush1.bf16.xpose.msra.mxu0 %v200
    %220 = vmatprep.subr.bf16.mxu0 0
    %221 = vmatpush1.bf16.xpose.msra.mxu0 %v203
    %222 = vmatprep.subr.bf16.mxu0 0
    %223 = vmatpush1.bf16.xpose.msra.mxu0 %v206
    %224 = vmatprep.subr.bf16.mxu0 0
    %225 = vmatpush1.bf16.xpose.msra.mxu0 0
    %226 = vmatprep.subr.bf16.mxu0 0
    %227 = vmatpush1.bf16.xpose.msra.mxu0 0
    %228 = vmatprep.subr.bf16.mxu0 0
    %229 = vmatpush1.bf16.xpose.msra.mxu0 0
    %230 = vmatprep.subr.bf16.mxu0 0
    %231 = vmatpush1.bf16.xpose.msra.mxu0 0
    %232 = vmatprep.subr.bf16.mxu0 0
    %233 = vmatpush1.bf16.xpose.msra.mxu0 0
    %234 = vmatprep.subr.bf16.mxu0 0
    %235 = vmatpush1.bf16.xpose.msra.mxu0 0
    %236 = vmatprep.subr.bf16.mxu0 0
    %237 = vmatpush1.bf16.xpose.msra.mxu0 0
    %238 = vmatprep.subr.bf16.mxu0 0
    %239 = vmatpush1.bf16.xpose.msra.mxu0 0
    %240 = vmatprep.mubr.bf16.mxu0 0
    %241 = vmatmul.mubr.bf16.gmra.mrb[0].mxu0 %v161
    %v242 = vpop.f32.mrb[0].mxu0
    %v243 = vadd.f32 %v77, %v242
    %v244 = vpop.f32.mrb[0].mxu0
    %v245 = vpop.f32.mrb[0].mxu0
    %v246 = vadd.f32 %v77, %v245
    %v247 = vpop.f32.mrb[0].mxu0
    %248 = vmatprep.mubr.bf16.mxu0 0
    %249 = vmatmul.mubr.bf16.gmra.mrb[0].mxu0 %v164
    %v250 = vpop.f32.mrb[0].mxu0
    %v251 = vadd.f32 %v77, %v250
    %v252 = vpop.f32.mrb[0].mxu0
    %v253 = vpop.f32.mrb[0].mxu0
    %v254 = vadd.f32 %v77, %v253
    %v255 = vpop.f32.mrb[0].mxu0
    %256 = vmatprep.mubr.bf16.mxu0 0
    %257 = vmatmul.mubr.bf16.gmra.mrb[0].mxu0 %v167
    %v258 = vpop.f32.mrb[0].mxu0
    %v259 = vadd.f32 %v77, %v258
    %v260 = vpop.f32.mrb[0].mxu0
    %v261 = vpop.f32.mrb[0].mxu0
    %v262 = vadd.f32 %v77, %v261
    %v263 = vpop.f32.mrb[0].mxu0
    %264 = vmatprep.mubr.bf16.mxu0 0
    %265 = vmatmul.mubr.bf16.gmra.mrb[0].mxu0 %v170
    %v266 = vpop.f32.mrb[0].mxu0
    %v267 = vadd.f32 %v77, %v266
    %v268 = vpop.f32.mrb[0].mxu0
    %v269 = vpop.f32.mrb[0].mxu0
    %v270 = vadd.f32 %v77, %v269
    %v271 = vpop.f32.mrb[0].mxu0
    %272 = vmatprep.mubr.bf16.mxu0 0
    %273 = vmatmul.mubr.bf16.gmra.mrb[0].mxu0 %v173
    %v274 = vpop.f32.mrb[0].mxu0
    %v275 = vadd.f32 %v77, %v274
    %v276 = vpop.f32.mrb[0].mxu0
    %v277 = vpop.f32.mrb[0].mxu0
    %v278 = vadd.f32 %v77, %v277
    %v279 = vpop.f32.mrb[0].mxu0
    %280 = vmatprep.mubr.bf16.mxu0 0
    %281 = vmatmul.mubr.bf16.gmra.mrb[0].mxu0 %v176
    %v282 = vpop.f32.mrb[0].mxu0
    %v283 = vadd.f32 %v77, %v282
    %v284 = vpop.f32.mrb[0].mxu0
    %v285 = vpop.f32.mrb[0].mxu0
    %v286 = vadd.f32 %v77, %v285
    %v287 = vpop.f32.mrb[0].mxu0
    %288 = vmatprep.mubr.bf16.mxu0 0
    %289 = vmatmul.mubr.bf16.gmra.mrb[0].mxu0 %v179
    %v290 = vpop.f32.mrb[0].mxu0
    %v291 = vadd.f32 %v77, %v290
    %v292 = vpop.f32.mrb[0].mxu0
    %v293 = vpop.f32.mrb[0].mxu0
    %v294 = vadd.f32 %v77, %v293
    %v295 = vpop.f32.mrb[0].mxu0
    %296 = vmatprep.mubr.bf16.mxu0 0
    %297 = vmatmul.mubr.bf16.gmra.mrb[0].mxu0 %v182
    %v298 = vpop.f32.mrb[0].mxu0
    %v299 = vadd.f32 %v77, %v298
    %v300 = vpop.f32.mrb[0].mxu0
    %v301 = vpop.f32.mrb[0].mxu0
    %v302 = vadd.f32 %v77, %v301
    %v303 = vpop.f32.mrb[0].mxu0
    %304 = vdwg.mxu0
    %305 = vst [vmem:[#allocation2] sm:$0xff] %v243
    %306 = vst [vmem:[#allocation2 + $0x8] sm:$0xff] %v246
    %307 = vst [vmem:[#allocation2 + $0x10] sm:$0xff] %v251
    %308 = vst [vmem:[#allocation2 + $0x18] sm:$0xff] %v254
    %309 = vst [vmem:[#allocation2 + $0x20] sm:$0xff] %v259
    %310 = vst [vmem:[#allocation2 + $0x28] sm:$0xff] %v262
    %311 = vst [vmem:[#allocation2 + $0x30] sm:$0xff] %v267
    %312 = vst [vmem:[#allocation2 + $0x38] sm:$0xff] %v270
    %313 = vst [vmem:[#allocation2 + $0x40] sm:$0xff] %v275
    %314 = vst [vmem:[#allocation2 + $0x48] sm:$0xff] %v278
    %315 = vst [vmem:[#allocation2 + $0x50] sm:$0xff] %v283
    %316 = vst [vmem:[#allocation2 + $0x58] sm:$0xff] %v286
    %317 = vst [vmem:[#allocation2 + $0x60] sm:$0xff] %v291
    %318 = vst [vmem:[#allocation2 + $0x68] sm:$0xff] %v294
    %319 = vst [vmem:[#allocation2 + $0x70] sm:$0xff] %v299
    %320 = vst [vmem:[#allocation2 + $0x78] sm:$0xff] %v302
    %v321 = vld [vmem:[%s4] sm:$0x1]
    %v323 = vlaneseq
    %v324 = vshrl.u32 %v323, 7
    %v325 = vsub.s32 0, %v324
    %v326 = vrot.slane %v321, %v325
    %v328 = vld [vmem:[%s3] sm:$0x1]
    %v330 = vlaneseq
    %v331 = vshrl.u32 %v330, 7
    %v332 = vsub.s32 0, %v331
    %v333 = vrot.slane %v328, %v332
    %v335 = vld [vmem:[#allocation4] sm:$0xff]
    %336 = vst [vmem:[#allocation3] sm:$0xff] %v335
    %v337 = vld [vmem:[#allocation3] sm:$0xff]
    %v338 = vmul.f32 %v337, %v326
    %v339 = vld [vmem:[#allocation2] sm:$0xff]
    %v340 = vadd.f32 %v338, %v339
    %v341 = vsub.f32 %v340, %v333
    %v342 = vmul.f32 %v341, 5.0
    %v343 = vxor.u32 %v342, 2147483648
    %v344 = vmul.f32 %v343, 1.442695
    %v345 = vpow.pop %v344
    %v346 = vadd.f32 %v345, 1.0
    %v347 = vrcp.pop %v346
    %v348 = vmul.f32 1.0, %v347
    %349 = vst [vmem:[#allocation7] sm:$0xff] %v348
    %v350 = vsub.f32 1.0, %v348
    %v351 = vmul.f32 %v340, %v350
    %352 = vst [vmem:[#allocation3] sm:$0xff] %v351
    %v353 = vld [vmem:[#allocation3] sm:$0xff]
    %v354 = vmul.f32 %v353, %v326
    %s355 = scalar_lea.vmem [#allocation2], 8
    %v356 = vld [vmem:[%s355] sm:$0xff]
    %v357 = vadd.f32 %v354, %v356
    %v358 = vsub.f32 %v357, %v333
    %v359 = vmul.f32 %v358, 5.0
    %v360 = vxor.u32 %v359, 2147483648
    %v361 = vmul.f32 %v360, 1.442695
    %v362 = vpow.pop %v361
    %v363 = vadd.f32 %v362, 1.0
    %v364 = vrcp.pop %v363
    %v365 = vmul.f32 1.0, %v364
    %s366 = scalar_lea.vmem [#allocation7], 8
    %367 = vst [vmem:[%s366] sm:$0xff] %v365
    %v368 = vsub.f32 1.0, %v365
    %v369 = vmul.f32 %v357, %v368
    %370 = vst [vmem:[#allocation3] sm:$0xff] %v369
    %v371 = vld [vmem:[#allocation3] sm:$0xff]
    %v372 = vmul.f32 %v371, %v326
    %s373 = scalar_lea.vmem [#allocation2], 16
    %v374 = vld [vmem:[%s373] sm:$0xff]
    %v375 = vadd.f32 %v372, %v374
    %v376 = vsub.f32 %v375, %v333
    %v377 = vmul.f32 %v376, 5.0
    %v378 = vxor.u32 %v377, 2147483648
    %v379 = vmul.f32 %v378, 1.442695
    %v380 = vpow.pop %v379
    %v381 = vadd.f32 %v380, 1.0
    %v382 = vrcp.pop %v381
    %v383 = vmul.f32 1.0, %v382
    %s384 = scalar_lea.vmem [#allocation7], 16
    %385 = vst [vmem:[%s384] sm:$0xff] %v383
    %v386 = vsub.f32 1.0, %v383
    %v387 = vmul.f32 %v375, %v386
    %388 = vst [vmem:[#allocation3] sm:$0xff] %v387
    %v389 = vld [vmem:[#allocation3] sm:$0xff]
    %v390 = vmul.f32 %v389, %v326
    %s391 = scalar_lea.vmem [#allocation2], 24
    %v392 = vld [vmem:[%s391] sm:$0xff]
    %v393 = vadd.f32 %v390, %v392
    %v394 = vsub.f32 %v393, %v333
    %v395 = vmul.f32 %v394, 5.0
    %v396 = vxor.u32 %v395, 2147483648
    %v397 = vmul.f32 %v396, 1.442695
    %v398 = vpow.pop %v397
    %v399 = vadd.f32 %v398, 1.0
    %v400 = vrcp.pop %v399
    %v401 = vmul.f32 1.0, %v400
    %s402 = scalar_lea.vmem [#allocation7], 24
    %403 = vst [vmem:[%s402] sm:$0xff] %v401
    %v404 = vsub.f32 1.0, %v401
    %v405 = vmul.f32 %v393, %v404
    %406 = vst [vmem:[#allocation3] sm:$0xff] %v405
    %v407 = vld [vmem:[#allocation3] sm:$0xff]
    %v408 = vmul.f32 %v407, %v326
    %s409 = scalar_lea.vmem [#allocation2], 32
    %v410 = vld [vmem:[%s409] sm:$0xff]
    %v411 = vadd.f32 %v408, %v410
    %v412 = vsub.f32 %v411, %v333
    %v413 = vmul.f32 %v412, 5.0
    %v414 = vxor.u32 %v413, 2147483648
    %v415 = vmul.f32 %v414, 1.442695
    %v416 = vpow.pop %v415
    %v417 = vadd.f32 %v416, 1.0
    %v418 = vrcp.pop %v417
    %v419 = vmul.f32 1.0, %v418
    %s420 = scalar_lea.vmem [#allocation7], 32
    %421 = vst [vmem:[%s420] sm:$0xff] %v419
    %v422 = vsub.f32 1.0, %v419
    %v423 = vmul.f32 %v411, %v422
    %424 = vst [vmem:[#allocation3] sm:$0xff] %v423
    %v425 = vld [vmem:[#allocation3] sm:$0xff]
    %v426 = vmul.f32 %v425, %v326
    %s427 = scalar_lea.vmem [#allocation2], 40
    %v428 = vld [vmem:[%s427] sm:$0xff]
    %v429 = vadd.f32 %v426, %v428
    %v430 = vsub.f32 %v429, %v333
    %v431 = vmul.f32 %v430, 5.0
    %v432 = vxor.u32 %v431, 2147483648
    %v433 = vmul.f32 %v432, 1.442695
    %v434 = vpow.pop %v433
    %v435 = vadd.f32 %v434, 1.0
    %v436 = vrcp.pop %v435
    %v437 = vmul.f32 1.0, %v436
    %s438 = scalar_lea.vmem [#allocation7], 40
    %439 = vst [vmem:[%s438] sm:$0xff] %v437
    %v440 = vsub.f32 1.0, %v437
    %v441 = vmul.f32 %v429, %v440
    %442 = vst [vmem:[#allocation3] sm:$0xff] %v441
    %v443 = vld [vmem:[#allocation3] sm:$0xff]
    %v444 = vmul.f32 %v443, %v326
    %s445 = scalar_lea.vmem [#allocation2], 48
    %v446 = vld [vmem:[%s445] sm:$0xff]
    %v447 = vadd.f32 %v444, %v446
    %v448 = vsub.f32 %v447, %v333
    %v449 = vmul.f32 %v448, 5.0
    %v450 = vxor.u32 %v449, 2147483648
    %v451 = vmul.f32 %v450, 1.442695
    %v452 = vpow.pop %v451
    %v453 = vadd.f32 %v452, 1.0
    %v454 = vrcp.pop %v453
    %v455 = vmul.f32 1.0, %v454
    %s456 = scalar_lea.vmem [#allocation7], 48
    %457 = vst [vmem:[%s456] sm:$0xff] %v455
    %v458 = vsub.f32 1.0, %v455
    %v459 = vmul.f32 %v447, %v458
    %460 = vst [vmem:[#allocation3] sm:$0xff] %v459
    %v461 = vld [vmem:[#allocation3] sm:$0xff]
    %v462 = vmul.f32 %v461, %v326
    %s463 = scalar_lea.vmem [#allocation2], 56
    %v464 = vld [vmem:[%s463] sm:$0xff]
    %v465 = vadd.f32 %v462, %v464
    %v466 = vsub.f32 %v465, %v333
    %v467 = vmul.f32 %v466, 5.0
    %v468 = vxor.u32 %v467, 2147483648
    %v469 = vmul.f32 %v468, 1.442695
    %v470 = vpow.pop %v469
    %v471 = vadd.f32 %v470, 1.0
    %v472 = vrcp.pop %v471
    %v473 = vmul.f32 1.0, %v472
    %s474 = scalar_lea.vmem [#allocation7], 56
    %475 = vst [vmem:[%s474] sm:$0xff] %v473
    %v476 = vsub.f32 1.0, %v473
    %v477 = vmul.f32 %v465, %v476
    %478 = vst [vmem:[#allocation3] sm:$0xff] %v477
    %v479 = vld [vmem:[#allocation3] sm:$0xff]
    %v480 = vmul.f32 %v479, %v326
    %s481 = scalar_lea.vmem [#allocation2], 64
    %v482 = vld [vmem:[%s481] sm:$0xff]
    %v483 = vadd.f32 %v480, %v482
    %v484 = vsub.f32 %v483, %v333
    %v485 = vmul.f32 %v484, 5.0
    %v486 = vxor.u32 %v485, 2147483648
    %v487 = vmul.f32 %v486, 1.442695
    %v488 = vpow.pop %v487
    %v489 = vadd.f32 %v488, 1.0
    %v490 = vrcp.pop %v489
    %v491 = vmul.f32 1.0, %v490
    %s492 = scalar_lea.vmem [#allocation7], 64
    %493 = vst [vmem:[%s492] sm:$0xff] %v491
    %v494 = vsub.f32 1.0, %v491
    %v495 = vmul.f32 %v483, %v494
    %496 = vst [vmem:[#allocation3] sm:$0xff] %v495
    %v497 = vld [vmem:[#allocation3] sm:$0xff]
    %v498 = vmul.f32 %v497, %v326
    %s499 = scalar_lea.vmem [#allocation2], 72
    %v500 = vld [vmem:[%s499] sm:$0xff]
    %v501 = vadd.f32 %v498, %v500
    %v502 = vsub.f32 %v501, %v333
    %v503 = vmul.f32 %v502, 5.0
    %v504 = vxor.u32 %v503, 2147483648
    %v505 = vmul.f32 %v504, 1.442695
    %v506 = vpow.pop %v505
    %v507 = vadd.f32 %v506, 1.0
    %v508 = vrcp.pop %v507
    %v509 = vmul.f32 1.0, %v508
    %s510 = scalar_lea.vmem [#allocation7], 72
    %511 = vst [vmem:[%s510] sm:$0xff] %v509
    %v512 = vsub.f32 1.0, %v509
    %v513 = vmul.f32 %v501, %v512
    %514 = vst [vmem:[#allocation3] sm:$0xff] %v513
    %v515 = vld [vmem:[#allocation3] sm:$0xff]
    %v516 = vmul.f32 %v515, %v326
    %s517 = scalar_lea.vmem [#allocation2], 80
    %v518 = vld [vmem:[%s517] sm:$0xff]
    %v519 = vadd.f32 %v516, %v518
    %v520 = vsub.f32 %v519, %v333
    %v521 = vmul.f32 %v520, 5.0
    %v522 = vxor.u32 %v521, 2147483648
    %v523 = vmul.f32 %v522, 1.442695
    %v524 = vpow.pop %v523
    %v525 = vadd.f32 %v524, 1.0
    %v526 = vrcp.pop %v525
    %v527 = vmul.f32 1.0, %v526
    %s528 = scalar_lea.vmem [#allocation7], 80
    %529 = vst [vmem:[%s528] sm:$0xff] %v527
    %v530 = vsub.f32 1.0, %v527
    %v531 = vmul.f32 %v519, %v530
    %532 = vst [vmem:[#allocation3] sm:$0xff] %v531
    %v533 = vld [vmem:[#allocation3] sm:$0xff]
    %v534 = vmul.f32 %v533, %v326
    %s535 = scalar_lea.vmem [#allocation2], 88
    %v536 = vld [vmem:[%s535] sm:$0xff]
    %v537 = vadd.f32 %v534, %v536
    %v538 = vsub.f32 %v537, %v333
    %v539 = vmul.f32 %v538, 5.0
    %v540 = vxor.u32 %v539, 2147483648
    %v541 = vmul.f32 %v540, 1.442695
    %v542 = vpow.pop %v541
    %v543 = vadd.f32 %v542, 1.0
    %v544 = vrcp.pop %v543
    %v545 = vmul.f32 1.0, %v544
    %s546 = scalar_lea.vmem [#allocation7], 88
    %547 = vst [vmem:[%s546] sm:$0xff] %v545
    %v548 = vsub.f32 1.0, %v545
    %v549 = vmul.f32 %v537, %v548
    %550 = vst [vmem:[#allocation3] sm:$0xff] %v549
    %v551 = vld [vmem:[#allocation3] sm:$0xff]
    %v552 = vmul.f32 %v551, %v326
    %s553 = scalar_lea.vmem [#allocation2], 96
    %v554 = vld [vmem:[%s553] sm:$0xff]
    %v555 = vadd.f32 %v552, %v554
    %v556 = vsub.f32 %v555, %v333
    %v557 = vmul.f32 %v556, 5.0
    %v558 = vxor.u32 %v557, 2147483648
    %v559 = vmul.f32 %v558, 1.442695
    %v560 = vpow.pop %v559
    %v561 = vadd.f32 %v560, 1.0
    %v562 = vrcp.pop %v561
    %v563 = vmul.f32 1.0, %v562
    %s564 = scalar_lea.vmem [#allocation7], 96
    %565 = vst [vmem:[%s564] sm:$0xff] %v563
    %v566 = vsub.f32 1.0, %v563
    %v567 = vmul.f32 %v555, %v566
    %568 = vst [vmem:[#allocation3] sm:$0xff] %v567
    %v569 = vld [vmem:[#allocation3] sm:$0xff]
    %v570 = vmul.f32 %v569, %v326
    %s571 = scalar_lea.vmem [#allocation2], 104
    %v572 = vld [vmem:[%s571] sm:$0xff]
    %v573 = vadd.f32 %v570, %v572
    %v574 = vsub.f32 %v573, %v333
    %v575 = vmul.f32 %v574, 5.0
    %v576 = vxor.u32 %v575, 2147483648
    %v577 = vmul.f32 %v576, 1.442695
    %v578 = vpow.pop %v577
    %v579 = vadd.f32 %v578, 1.0
    %v580 = vrcp.pop %v579
    %v581 = vmul.f32 1.0, %v580
    %s582 = scalar_lea.vmem [#allocation7], 104
    %583 = vst [vmem:[%s582] sm:$0xff] %v581
    %v584 = vsub.f32 1.0, %v581
    %v585 = vmul.f32 %v573, %v584
    %586 = vst [vmem:[#allocation3] sm:$0xff] %v585
    %v587 = vld [vmem:[#allocation3] sm:$0xff]
    %v588 = vmul.f32 %v587, %v326
    %s589 = scalar_lea.vmem [#allocation2], 112
    %v590 = vld [vmem:[%s589] sm:$0xff]
    %v591 = vadd.f32 %v588, %v590
    %v592 = vsub.f32 %v591, %v333
    %v593 = vmul.f32 %v592, 5.0
    %v594 = vxor.u32 %v593, 2147483648
    %v595 = vmul.f32 %v594, 1.442695
    %v596 = vpow.pop %v595
    %v597 = vadd.f32 %v596, 1.0
    %v598 = vrcp.pop %v597
    %v599 = vmul.f32 1.0, %v598
    %s600 = scalar_lea.vmem [#allocation7], 112
    %601 = vst [vmem:[%s600] sm:$0xff] %v599
    %v602 = vsub.f32 1.0, %v599
    %v603 = vmul.f32 %v591, %v602
    %604 = vst [vmem:[#allocation3] sm:$0xff] %v603
    %v605 = vld [vmem:[#allocation3] sm:$0xff]
    %v606 = vmul.f32 %v605, %v326
    %s607 = scalar_lea.vmem [#allocation2], 120
    %v608 = vld [vmem:[%s607] sm:$0xff]
    %v609 = vadd.f32 %v606, %v608
    %v610 = vsub.f32 %v609, %v333
    %v611 = vmul.f32 %v610, 5.0
    %v612 = vxor.u32 %v611, 2147483648
    %v613 = vmul.f32 %v612, 1.442695
    %v614 = vpow.pop %v613
    %v615 = vadd.f32 %v614, 1.0
    %v616 = vrcp.pop %v615
    %v617 = vmul.f32 1.0, %v616
    %s618 = scalar_lea.vmem [#allocation7], 120
    %619 = vst [vmem:[%s618] sm:$0xff] %v617
    %v620 = vsub.f32 1.0, %v617
    %v621 = vmul.f32 %v609, %v620
    %622 = vst [vmem:[#allocation3] sm:$0xff] %v621
    %v623 = vld [vmem:[#allocation3] sm:$0xff]
    %624 = vst [vmem:[#allocation8] sm:$0xff] %v623
    // Predicated region
    $region30: #{lif_forward_sequence.1} parent=1 // pred_check
      _
    $region31: #{lif_forward_sequence.1} parent=1 // pred_check_branch
      %626 = sbr.rel (0) target = $region33
    $region32: #{lif_forward_sequence.1} parent=1 // pred_region
      %s628 = ssub.s32 2048, 2048
      %629 = vsyncadd [#allocation6], %s628
      %s630 = sshll.u32 [#allocation7], 4
      %s631 = int_to_ptr.vmem [resolvable:$true] %s630
      %636 = dma.vmem_to_hbm [thread:$0]  %s631, 2048, %s6, [#allocation6], 128, 128, 8
    $region33: #{lif_forward_sequence.1} parent=1 // pred_fallthru
      _
    // Predicated region
    $region34: #{lif_forward_sequence.1} parent=1 // pred_check
      _
    $region35: #{lif_forward_sequence.1} parent=1 // pred_check_branch
      %638 = sbr.rel (0) target = $region37
    $region36: #{lif_forward_sequence.1} parent=1 // pred_region
      %s640 = ssub.s32 128, 128
      %641 = vsyncadd [#allocation9], %s640
      %s643 = sshll.u32 [#allocation8], 4
      %s644 = int_to_ptr.vmem [resolvable:$true] %s643
      %646 = dma.vmem_to_hbm [thread:$0]  %s644, 128, %s7, [#allocation9]
    $region37: #{lif_forward_sequence.1} parent=1 // pred_fallthru
      _
    // Predicated region
    $region38: #{lif_forward_sequence.1} parent=1 // pred_check
      _
    $region39: #{lif_forward_sequence.1} parent=1 // pred_check_branch
      %648 = sbr.rel (0) target = $region41
    $region40: #{lif_forward_sequence.1} parent=1 // pred_region
      %649 = dma.done [#allocation6], 2048
    $region41: #{lif_forward_sequence.1} parent=1 // pred_fallthru
      _
    // Predicated region
    $region42: #{lif_forward_sequence.1} parent=1 // pred_check
      _
    $region43: #{lif_forward_sequence.1} parent=1 // pred_check_branch
      %651 = sbr.rel (0) target = $region45
    $region44: #{lif_forward_sequence.1} parent=1 // pred_region
      %652 = dma.done [#allocation9], 128
    $region45: #{lif_forward_sequence.1} parent=1 // pred_fallthru
      _
    %653 = vsyncpa [#allocation5], 1
    %654 = vsyncpa [#allocation6], 1
    %655 = vsyncpa [#allocation9], 1

</llo_original>
